<compile_context>
chip_gen: v7x
topology: tpu7x:2x2x1
jax: 0.10.0
libtpu: 0.0.40
codegen_flags: <defaults>
</compile_context>

<pallas_src>
import functools

import jax
import jax.numpy as jnp
from jax.experimental import pallas as pl
from jax.experimental.pallas import tpu as pltpu


def _round_up(x, m):
    return ((x + m - 1) // m) * m


# ----------------------------------------------------------------------------
# Kernel 1: fused 1x1-conv chain + max-pool over points.
#   grid = (B, n_splits, tiles_per_split); the last axis is the reduction over
#   point tiles; each (b, split) owns one (1,1,1,C_out) running-max block.
# ----------------------------------------------------------------------------

def _conv_chain_pool_kernel(*refs, num_layers, n_valid, bn, tiles_per_split,
                            last_relu, needs_mask):
    x_ref = refs[0]
    layer_refs = refs[1:1 + 3 * num_layers]
    o_ref = refs[1 + 3 * num_layers]          # (1, 1, 1, C_out) running max

    s_id = pl.program_id(1)
    nb = pl.program_id(2)

    @pl.when(nb == 0)
    def _init():
        o_ref[...] = jnp.full_like(o_ref, -jnp.inf)

    h = x_ref[0].astype(jnp.bfloat16)
    y = None
    for l in range(num_layers):
        w_ref, sc_ref, sh_ref = layer_refs[3 * l:3 * l + 3]
        w = w_ref[0] if len(w_ref.shape) == 3 else w_ref[...]   # per-batch or shared
        y = jnp.dot(h, w, preferred_element_type=jnp.float32)
        y = y * sc_ref[...] + sh_ref[...]                       # folded BN (+bias)
        if l < num_layers - 1 or last_relu:
            y = jnp.maximum(y, 0.0)
        if l < num_layers - 1:
            h = y.astype(jnp.bfloat16)

    if needs_mask:
        # Only emitted when the tiling does not exactly cover the valid rows
        # (ragged edge, wrapper row padding, or a duplicated clamp tile).
        row = (s_id * tiles_per_split + nb) * bn + \
            jax.lax.broadcasted_iota(jnp.int32, (bn, 1), 0)
        y = jnp.where(row < n_valid, y, -jnp.inf)

    tile_max = jnp.max(y, axis=0, keepdims=True)                # (1, C_out)
    o_ref[...] = jnp.maximum(o_ref[...], tile_max[None, None])


def conv_chain_maxpool(x, layers, *, last_relu, n_valid=None,
                       bn_target=512, n_splits=None):
    """x: [B, N, Cin] (N a multiple of 16, bf16 preferred).
    layers: [(w, scale, shift), ...]; each w is either [Cin, Cout] (shared) or
    [B or 1, Cin, Cout] (per-batch composed).  Returns the max over the first
    n_valid points of the fused chain: [B, C_out]."""
    B, N, Cin = x.shape
    if n_valid is None:
        n_valid = N
    bn = min(bn_target, _round_up(N, 16))
    n_tiles = pl.cdiv(N, bn)
    if n_splits is None:
        n_splits = 2 if n_tiles >= 2 else 1   # feed both v7x TensorCores
    tps = pl.cdiv(n_tiles, n_splits)          # tiles per split
    overshoot = n_splits * tps > n_tiles      # last split may revisit a tile
    needs_mask = (n_splits * tps * bn != n_valid)
    c_out = layers[-1][0].shape[-1]

    def x_map(b, s, n):
        blk = s * tps + n
        if overshoot:
            blk = jnp.minimum(blk, n_tiles - 1)   # duplicate tile is fully masked
        return (b, blk, 0)

    def w3_batch(b, s, n):
        return (b, 0, 0)

    def w3_shared(b, s, n):
        return (0, 0, 0)

    def w2_map(b, s, n):
        return (0, 0)

    in_specs = [pl.BlockSpec((1, bn, Cin), x_map)]
    ops = [x]
    for (w, sc, sh) in layers:
        if w.ndim == 3:
            imap = w3_batch if w.shape[0] == B else w3_shared
            w_spec = pl.BlockSpec((1,) + w.shape[1:], imap)
        else:
            w_spec = pl.BlockSpec(w.shape, w2_map)
        in_specs += [w_spec,
                     pl.BlockSpec(sc.shape, w2_map),
                     pl.BlockSpec(sh.shape, w2_map)]
        ops += [w, sc, sh]

    kernel = functools.partial(
        _conv_chain_pool_kernel, num_layers=len(layers), n_valid=n_valid, bn=bn,
        tiles_per_split=tps, last_relu=last_relu, needs_mask=needs_mask)

    out = pl.pallas_call(
        kernel,
        out_shape=jax.ShapeDtypeStruct((n_splits, B, 1, c_out), jnp.float32),
        grid=(B, n_splits, tps),
        in_specs=in_specs,
        out_specs=pl.BlockSpec((1, 1, 1, c_out), lambda b, s, n: (s, b, 0, 0)),
        compiler_params=pltpu.CompilerParams(
            dimension_semantics=("parallel", "parallel", "arbitrary"),
            vmem_limit_bytes=32 * 1024 * 1024),
    )(*ops)
    return jnp.max(out, axis=0).reshape(B, c_out)


# ----------------------------------------------------------------------------
# Kernel 2: fused FC head (fc1 -> fc2 -> fc3 [+ log-softmax]).
# ----------------------------------------------------------------------------

def _fc_head_kernel(x_ref, w1, s1, t1, w2, s2, t2, w3, s3, t3, o_ref,
                    *, log_softmax):
    y = jnp.dot(x_ref[...].astype(jnp.bfloat16), w1[...],
                preferred_element_type=jnp.float32)
    y = jnp.maximum(y * s1[...] + t1[...], 0.0)
    y = jnp.dot(y.astype(jnp.bfloat16), w2[...],
                preferred_element_type=jnp.float32)
    y = jnp.maximum(y * s2[...] + t2[...], 0.0)
    # TODO(synk): Dropout(p=0.3) before fc3 in the PointNet head is identity (eval).
    y = jnp.dot(y.astype(jnp.bfloat16), w3[...],
                preferred_element_type=jnp.float32)
    y = y * s3[...] + t3[...]
    if log_softmax:
        m = jnp.max(y, axis=-1, keepdims=True)
        z = y - m
        y = z - jnp.log(jnp.sum(jnp.exp(z), axis=-1, keepdims=True))
    o_ref[...] = y.astype(o_ref.dtype)


def fc_head(x, l1, l2, l3, *, log_softmax):
    """x: [B, K]; l*: (w, scale, shift). Whole problem fits in VMEM (M = B)."""
    B = x.shape[0]
    out_dim = l3[0].shape[-1]
    args = [x]
    for (w, s, t) in (l1, l2, l3):
        args += [w.astype(jnp.bfloat16), s, t]
    return pl.pallas_call(
        functools.partial(_fc_head_kernel, log_softmax=log_softmax),
        out_shape=jax.ShapeDtypeStruct((B, out_dim), jnp.float32),
    )(*args)


# ----------------------------------------------------------------------------
# Deterministic parameter construction (PyTorch-style init, BN folded).
# ----------------------------------------------------------------------------

def make_fused_layer(key, c_in, c_out, with_bn=True, pad_in_to=None):
    k1, k2, k3, k4, k5, k6 = jax.random.split(key, 6)
    bound = 1.0 / (c_in ** 0.5)
    w = jax.random.uniform(k1, (c_in, c_out), jnp.float32, -bound, bound)
    b = jax.random.uniform(k2, (c_out,), jnp.float32, -bound, bound)
    if with_bn:
        eps = 1e-5
        gamma = 1.0 + 0.1 * jax.random.normal(k3, (c_out,), jnp.float32)
        beta = 0.1 * jax.random.normal(k4, (c_out,), jnp.float32)
        mean = 0.1 * jax.random.normal(k5, (c_out,), jnp.float32)
        var = jnp.abs(1.0 + 0.1 * jax.random.normal(k6, (c_out,), jnp.float32))
        scale = gamma / jnp.sqrt(var + eps)
        shift = (b - mean) * scale + beta
    else:
        scale = jnp.ones((c_out,), jnp.float32)
        shift = b
    if pad_in_to is not None and pad_in_to > c_in:
        w = jnp.pad(w, ((0, pad_in_to - c_in), (0, 0)))
    return w, scale.reshape(1, -1), shift.reshape(1, -1)


def make_tnet_params(key, k, pad_first_to=None):
    ks = jax.random.split(key, 6)
    return {
        "conv1": make_fused_layer(ks[0], k, 64, True, pad_in_to=pad_first_to),
        "conv2": make_fused_layer(ks[1], 64, 128, True),
        "conv3": make_fused_layer(ks[2], 128, 1024, True),
        "fc1": make_fused_layer(ks[3], 1024, 512, True),
        "fc2": make_fused_layer(ks[4], 512, 256, True),
        "fc3": make_fused_layer(ks[5], 256, k * k, False),
    }


def make_params(key, classes=40):
    ks = jax.random.split(key, 8)
    transform = {
        "tnet3": make_tnet_params(ks[0], 3, pad_first_to=8),
        "tnet64": make_tnet_params(ks[1], 64),
        "conv1": make_fused_layer(ks[2], 3, 64, True),      # composed with m3
        "conv2": make_fused_layer(ks[3], 64, 128, True),    # composed with m64
        "conv3": make_fused_layer(ks[4], 128, 1024, True),
    }
    return {
        "transform": transform,
        "fc1": make_fused_layer(ks[5], 1024, 512, True),
        "fc2": make_fused_layer(ks[6], 512, 256, True),
        "fc3": make_fused_layer(ks[7], 256, classes, False),
    }


# ----------------------------------------------------------------------------
# Forward passes (tiny glue in plain JAX; hot paths in the fused kernels).
# ----------------------------------------------------------------------------

def tnet_forward(x_bnc, p, k, *, n_valid, prefix_layers=()):
    """x_bnc: [B, N, Cin]; prefix_layers are prepended (with ReLU) to the
    conv chain (used to recompute h1 in-kernel for the tnet64 chain)."""
    B = x_bnc.shape[0]
    w1, s1, t1 = p["conv1"]
    w2, s2, t2 = p["conv2"]
    w3, s3, t3 = p["conv3"]
    layers = list(prefix_layers) + [
        (w1.astype(jnp.bfloat16), s1, t1),
        (w2.astype(jnp.bfloat16), s2, t2),
        (w3.astype(jnp.bfloat16), s3, t3),
    ]
    pooled = conv_chain_maxpool(x_bnc, layers, last_relu=True, n_valid=n_valid)
    mat = fc_head(pooled, p["fc1"], p["fc2"], p["fc3"], log_softmax=False)
    return mat.reshape(B, k, k) + jnp.eye(k, dtype=mat.dtype)[None]


def transform_forward(x8_bnc, p, *, n_valid):
    """x8_bnc: [B, Npad, 8] bf16 (xyz zero-padded to 8 channels, rows padded)."""
    # --- input transform (k=3) ---
    m3 = tnet_forward(x8_bnc, p["tnet3"], 3, n_valid=n_valid)            # [B,3,3]

    # Compose Transform.conv1 with the point transform: x @ (m3 @ W1); the
    # composed per-batch layer is prepended to BOTH downstream chains so the
    # [B,N,64] activation never round-trips through HBM.
    w1, s1, t1 = p["conv1"]                                              # [3, 64]
    w1b = jnp.einsum("bij,jo->bio", m3, w1)                              # [B,3,64]
    w1b = jnp.pad(w1b, ((0, 0), (0, 5), (0, 0))).astype(jnp.bfloat16)    # [B,8,64]
    pre = (w1b, s1, t1)

    # --- feature transform (k=64): recompute h1 in-kernel from x8 ---
    m64 = tnet_forward(x8_bnc, p["tnet64"], 64, n_valid=n_valid,
                       prefix_layers=(pre,))                             # [B,64,64]

    # --- main chain: (conv1∘m3) -> (conv2∘m64) -> conv3 -> maxpool ---
    w2, s2, t2 = p["conv2"]
    w2b = jnp.einsum("bij,jo->bio", m64, w2).astype(jnp.bfloat16)        # [B,64,128]
    w3, s3, t3 = p["conv3"]
    layers = [pre, (w2b, s2, t2), (w3.astype(jnp.bfloat16), s3, t3)]
    pooled = conv_chain_maxpool(x8_bnc, layers, last_relu=False,
                                n_valid=n_valid)                         # [B,1024]
    return pooled, m3, m64


def pointnet_forward(x_bcn, params):
    # x_bcn: PyTorch NCW layout [B, 3, N] -> channels-last, rows padded to a
    # multiple of 16, channels padded 3 -> 8, cast once to bf16.
    B, _, N = x_bcn.shape
    x_bnc = jnp.transpose(x_bcn, (0, 2, 1))
    n_pad = _round_up(N, 16)
    x8 = jnp.pad(x_bnc, ((0, 0), (0, n_pad - N), (0, 5))).astype(jnp.bfloat16)
    feat, m3, m64 = transform_forward(x8, params["transform"], n_valid=N)
    logp = fc_head(feat, params["fc1"], params["fc2"], params["fc3"],
                   log_softmax=True)                                     # [B,classes]
    return logp, m3, m64


# ----------------------------------------------------------------------------
# Pure-JAX reference of the fused conv chain (mirrors the kernel's bf16 casts),
# used to validate tiling / ragged masking / N-split combine logic.
# ----------------------------------------------------------------------------

def _chain_reference(x, layers, *, last_relu):
    B = x.shape[0]
    h = x.astype(jnp.bfloat16)
    y = None
    for i, (w, sc, sh) in enumerate(layers):
        if w.ndim == 3:
            wb = jnp.broadcast_to(w, (B,) + w.shape[1:])
            y = jnp.einsum("bnc,bco->bno", h, wb,
                           preferred_element_type=jnp.float32)
        else:
            y = jnp.einsum("bnc,co->bno", h, w,
                           preferred_element_type=jnp.float32)
        y = y * sc.reshape(1, 1, -1) + sh.reshape(1, 1, -1)
        if i < len(layers) - 1 or last_relu:
            y = jnp.maximum(y, 0.0)
        if i < len(layers) - 1:
            h = y.astype(jnp.bfloat16)
    return jnp.max(y, axis=1)


# ----------------------------------------------------------------------------

if __name__ == "__main__":
    key = jax.random.PRNGKey(0)
    kx, kp, k1, k2, k3 = jax.random.split(key, 5)

    # --- tiling / masking / split correctness check -------------------------
    # N=192, bn_target=64 -> 3 tiles, 2 splits of 2 tiles (one clamped duplicate
    # tile, fully masked), exercising the ragged-edge / clamp / combine paths.
    Bt, Nt, Ct = 2, 192, 8
    xt = jax.random.normal(k1, (Bt, Nt, Ct), jnp.float32).astype(jnp.bfloat16)
    lw1 = (0.1 * jax.random.normal(k2, (Bt, Ct, 64), jnp.float32)).astype(jnp.bfloat16)
    lw2 = (0.1 * jax.random.normal(k3, (64, 128), jnp.float32)).astype(jnp.bfloat16)
    layers_t = [
        (lw1, jnp.ones((1, 64), jnp.float32), jnp.zeros((1, 64), jnp.float32)),
        (lw2, jnp.ones((1, 128), jnp.float32), jnp.zeros((1, 128), jnp.float32)),
    ]
    got = conv_chain_maxpool(xt, layers_t, last_relu=True, bn_target=64)
    want = _chain_reference(xt, layers_t, last_relu=True)
    jax.block_until_ready((got, want))
    assert got.shape == want.shape
    assert bool(jnp.allclose(got, want, atol=1e-2, rtol=1e-2))

    # --- full PointNet forward ----------------------------------------------
    B, N, classes = 2, 64, 40
    x = jax.random.normal(kx, (B, 3, N), dtype=jnp.float32)   # [B, C=3, N] (NCW)
    params = make_params(kp, classes=classes)

    fwd = jax.jit(lambda inp: pointnet_forward(inp, params))
    logp, m3, m64 = fwd(x)
    jax.block_until_ready((logp, m3, m64))

    assert logp.shape == (B, classes)
    assert m3.shape == (B, 3, 3)
    assert m64.shape == (B, 64, 64)
    # log-softmax rows should exponentiate-sum to ~1
    assert bool(jnp.all(jnp.abs(jnp.sum(jnp.exp(logp), axis=1) - 1.0) < 1e-3))
    assert bool(jnp.all(jnp.isfinite(logp)))
    assert bool(jnp.all(jnp.isfinite(m3))) and bool(jnp.all(jnp.isfinite(m64)))

    print("KERNEL_OK")
</pallas_src>

<mosaic_0001>
module attributes {stable_mosaic.version = 11 : i64} {
  func.func @_conv_chain_pool_kernel(%arg0: i32, %arg1: i32, %arg2: i32, %arg3: memref<1x64x8xbf16, #tpu.memory_space<vmem>>, %arg4: memref<1x8x64xbf16, #tpu.memory_space<vmem>>, %arg5: memref<1x64xf32, #tpu.memory_space<vmem>>, %arg6: memref<1x64xf32, #tpu.memory_space<vmem>>, %arg7: memref<64x128xbf16, #tpu.memory_space<vmem>>, %arg8: memref<1x128xf32, #tpu.memory_space<vmem>>, %arg9: memref<1x128xf32, #tpu.memory_space<vmem>>, %arg10: memref<1x1x1x128xf32, #tpu.memory_space<vmem>>) attributes {dimension_semantics = [#tpu.dimension_semantics<parallel>, #tpu.dimension_semantics<parallel>, #tpu.dimension_semantics<arbitrary>], iteration_bounds = array<i64: 2, 2, 2>, scalar_prefetch = 0 : i64, scratch_operands = 0 : i64, tpu.core_type = #tpu.core_type<tc>, window_params = [{transform_indices = @transform_0, window_bounds = array<i64: 1, 64, 8>}, {transform_indices = @transform_1, window_bounds = array<i64: 1, 8, 64>}, {pipeline_mode = #tpu.pipeline_mode<synchronous>, transform_indices = @transform_2, window_bounds = array<i64: 1, 64>}, {pipeline_mode = #tpu.pipeline_mode<synchronous>, transform_indices = @transform_3, window_bounds = array<i64: 1, 64>}, {pipeline_mode = #tpu.pipeline_mode<synchronous>, transform_indices = @transform_4, window_bounds = array<i64: 64, 128>}, {pipeline_mode = #tpu.pipeline_mode<synchronous>, transform_indices = @transform_5, window_bounds = array<i64: 1, 128>}, {pipeline_mode = #tpu.pipeline_mode<synchronous>, transform_indices = @transform_6, window_bounds = array<i64: 1, 128>}, {transform_indices = @transform_7, window_bounds = array<i64: 1, 1, 1, 128>}]} {
    %c0_i32 = arith.constant 0 : i32
    %0 = arith.cmpi eq, %arg2, %c0_i32 : i32
    %1 = arith.extui %0 : i1 to i32
    %c0_i32_0 = arith.constant 0 : i32
    %2 = arith.cmpi ne, %1, %c0_i32_0 : i32
    scf.if %2 {
      %cst_29 = arith.constant 0xFF800000 : f32
      %45 = vector.broadcast %cst_29 : f32 to vector<1x1x1x128xf32>
      %c0_30 = arith.constant 0 : index
      %c0_31 = arith.constant 0 : index
      %c0_32 = arith.constant 0 : index
      %c0_33 = arith.constant 0 : index
      %46 = vector.load %arg10[%c0_30, %c0_31, %c0_32, %c0_33] : memref<1x1x1x128xf32, #tpu.memory_space<vmem>>, vector<1x1x1x128xf32>
      tpu.vector_store %arg10[%c0_30, %c0_31, %c0_32, %c0_33], %45 {strides = array<i32>} : memref<1x1x1x128xf32, #tpu.memory_space<vmem>>, vector<1x1x1x128xf32>,
    } else {
    }
    %c0 = arith.constant 0 : index
    %c0_1 = arith.constant 0 : index
    %c0_2 = arith.constant 0 : index
    %3 = vector.load %arg3[%c0, %c0_1, %c0_2] : memref<1x64x8xbf16, #tpu.memory_space<vmem>>, vector<1x64x8xbf16>
    %4 = vector.shape_cast %3 : vector<1x64x8xbf16> to vector<64x8xbf16>
    %c0_3 = arith.constant 0 : index
    %c0_4 = arith.constant 0 : index
    %c0_5 = arith.constant 0 : index
    %5 = vector.load %arg4[%c0_3, %c0_4, %c0_5] : memref<1x8x64xbf16, #tpu.memory_space<vmem>>, vector<1x8x64xbf16>
    %6 = vector.shape_cast %5 : vector<1x8x64xbf16> to vector<8x64xbf16>
    %cst = arith.constant dense<0.000000e+00> : vector<64x64xf32>
    %7 = tpu.matmul %4, %6, %cst {dimension_numbers = #tpu.dot_dimension_numbers<[1], [0], [0], [1], [0, 0, 1, 1], [], []>} : vector<64x8xbf16>, vector<8x64xbf16>, vector<64x64xf32> -> vector<64x64xf32>
    %c0_6 = arith.constant 0 : index
    %c0_7 = arith.constant 0 : index
    %8 = vector.load %arg5[%c0_6, %c0_7] : memref<1x64xf32, #tpu.memory_space<vmem>>, vector<1x64xf32>
    %9 = vector.broadcast %8 : vector<1x64xf32> to vector<64x64xf32>
    %10 = arith.mulf %7, %9 : vector<64x64xf32>
    %c0_8 = arith.constant 0 : index
    %c0_9 = arith.constant 0 : index
    %11 = vector.load %arg6[%c0_8, %c0_9] : memref<1x64xf32, #tpu.memory_space<vmem>>, vector<1x64xf32>
    %12 = vector.broadcast %11 : vector<1x64xf32> to vector<64x64xf32>
    %13 = arith.addf %10, %12 : vector<64x64xf32>
    %cst_10 = arith.constant 0.000000e+00 : f32
    %14 = vector.broadcast %cst_10 : f32 to vector<64x64xf32>
    %15 = arith.maximumf %13, %14 : vector<64x64xf32>
    %16 = arith.truncf %15 : vector<64x64xf32> to vector<64x64xbf16>
    %c0_11 = arith.constant 0 : index
    %c0_12 = arith.constant 0 : index
    %17 = vector.load %arg7[%c0_11, %c0_12] : memref<64x128xbf16, #tpu.memory_space<vmem>>, vector<64x128xbf16>
    %cst_13 = arith.constant dense<0.000000e+00> : vector<64x128xf32>
    %18 = tpu.matmul %16, %17, %cst_13 {dimension_numbers = #tpu.dot_dimension_numbers<[1], [0], [0], [1], [0, 0, 1, 1], [], []>} : vector<64x64xbf16>, vector<64x128xbf16>, vector<64x128xf32> -> vector<64x128xf32>
    %c0_14 = arith.constant 0 : index
    %c0_15 = arith.constant 0 : index
    %19 = vector.load %arg8[%c0_14, %c0_15] : memref<1x128xf32, #tpu.memory_space<vmem>>, vector<1x128xf32>
    %20 = vector.broadcast %19 : vector<1x128xf32> to vector<64x128xf32>
    %21 = arith.mulf %18, %20 : vector<64x128xf32>
    %c0_16 = arith.constant 0 : index
    %c0_17 = arith.constant 0 : index
    %22 = vector.load %arg9[%c0_16, %c0_17] : memref<1x128xf32, #tpu.memory_space<vmem>>, vector<1x128xf32>
    %23 = vector.broadcast %22 : vector<1x128xf32> to vector<64x128xf32>
    %24 = arith.addf %21, %23 : vector<64x128xf32>
    %cst_18 = arith.constant 0.000000e+00 : f32
    %25 = vector.broadcast %cst_18 : f32 to vector<64x128xf32>
    %26 = arith.maximumf %24, %25 : vector<64x128xf32>
    %c2_i32 = arith.constant 2 : i32
    %27 = arith.muli %arg1, %c2_i32 : i32
    %28 = arith.addi %27, %arg2 : i32
    %c64_i32 = arith.constant 64 : i32
    %29 = arith.muli %28, %c64_i32 : i32
    %30 = tpu.iota {dimensions = array<i32: 0>} : vector<64x1xi32>
    %31 = vector.broadcast %29 : i32 to vector<64x1xi32>
    %32 = arith.addi %31, %30 : vector<64x1xi32>
    %c192_i32 = arith.constant 192 : i32
    %33 = vector.broadcast %c192_i32 : i32 to vector<64x1xi32>
    %34 = arith.cmpi slt, %32, %33 : vector<64x1xi32>
    %cst_19 = arith.constant 0xFF800000 : f32
    %35 = vector.shape_cast %34 : vector<64x1xi1> to vector<64x1xi1>
    %36 = vector.broadcast %35 : vector<64x1xi1> to vector<64x128xi1>
    %37 = vector.broadcast %cst_19 : f32 to vector<64x128xf32>
    %38 = arith.select %36, %26, %37 : vector<64x128xi1>, vector<64x128xf32>
    %cst_20 = arith.constant dense<0xFF800000> : vector<128xf32>
    %39 = vector.multi_reduction <maximumf>, %38, %cst_20 [0] : vector<64x128xf32> to vector<128xf32>
    %40 = vector.shape_cast %39 : vector<128xf32> to vector<1x128xf32>
    %c0_21 = arith.constant 0 : index
    %c0_22 = arith.constant 0 : index
    %c0_23 = arith.constant 0 : index
    %c0_24 = arith.constant 0 : index
    %41 = vector.load %arg10[%c0_21, %c0_22, %c0_23, %c0_24] : memref<1x1x1x128xf32, #tpu.memory_space<vmem>>, vector<1x1x1x128xf32>
    %42 = vector.shape_cast %40 : vector<1x128xf32> to vector<1x1x1x128xf32>
    %43 = arith.maximumf %41, %42 : vector<1x1x1x128xf32>
    %c0_25 = arith.constant 0 : index
    %c0_26 = arith.constant 0 : index
    %c0_27 = arith.constant 0 : index
    %c0_28 = arith.constant 0 : index
    %44 = vector.load %arg10[%c0_25, %c0_26, %c0_27, %c0_28] : memref<1x1x1x128xf32, #tpu.memory_space<vmem>>, vector<1x1x1x128xf32>
    tpu.vector_store %arg10[%c0_25, %c0_26, %c0_27, %c0_28], %43 {strides = array<i32>} : memref<1x1x1x128xf32, #tpu.memory_space<vmem>>, vector<1x1x1x128xf32>,
    return
  }
  func.func @transform_0(%arg0: i32, %arg1: i32, %arg2: i32) -> (i32, i32, i32) {
    %c2_i32 = arith.constant 2 : i32
    %0 = arith.muli %arg1, %c2_i32 : i32
    %1 = arith.addi %0, %arg2 : i32
    %c2_i32_0 = arith.constant 2 : i32
    %2 = arith.minsi %1, %c2_i32_0 : i32
    %c0_i32 = arith.constant 0 : i32
    %c0_i32_1 = arith.constant 0 : i32
    return %arg0, %2, %c0_i32 : i32, i32, i32
  }
  func.func @transform_1(%arg0: i32, %arg1: i32, %arg2: i32) -> (i32, i32, i32) {
    %c0_i32 = arith.constant 0 : i32
    %c0_i32_0 = arith.constant 0 : i32
    %c0_i32_1 = arith.constant 0 : i32
    return %arg0, %c0_i32, %c0_i32_0 : i32, i32, i32
  }
  func.func @transform_2(%arg0: i32, %arg1: i32, %arg2: i32) -> (i32, i32) {
    %c0_i32 = arith.constant 0 : i32
    %c0_i32_0 = arith.constant 0 : i32
    %c0_i32_1 = arith.constant 0 : i32
    return %c0_i32, %c0_i32_0 : i32, i32
  }
  func.func @transform_3(%arg0: i32, %arg1: i32, %arg2: i32) -> (i32, i32) {
    %c0_i32 = arith.constant 0 : i32
    %c0_i32_0 = arith.constant 0 : i32
    %c0_i32_1 = arith.constant 0 : i32
    return %c0_i32, %c0_i32_0 : i32, i32
  }
  func.func @transform_4(%arg0: i32, %arg1: i32, %arg2: i32) -> (i32, i32) {
    %c0_i32 = arith.constant 0 : i32
    %c0_i32_0 = arith.constant 0 : i32
    %c0_i32_1 = arith.constant 0 : i32
    return %c0_i32, %c0_i32_0 : i32, i32
  }
  func.func @transform_5(%arg0: i32, %arg1: i32, %arg2: i32) -> (i32, i32) {
    %c0_i32 = arith.constant 0 : i32
    %c0_i32_0 = arith.constant 0 : i32
    %c0_i32_1 = arith.constant 0 : i32
    return %c0_i32, %c0_i32_0 : i32, i32
  }
  func.func @transform_6(%arg0: i32, %arg1: i32, %arg2: i32) -> (i32, i32) {
    %c0_i32 = arith.constant 0 : i32
    %c0_i32_0 = arith.constant 0 : i32
    %c0_i32_1 = arith.constant 0 : i32
    return %c0_i32, %c0_i32_0 : i32, i32
  }
  func.func @transform_7(%arg0: i32, %arg1: i32, %arg2: i32) -> (i32, i32, i32, i32) {
    %c0_i32 = arith.constant 0 : i32
    %c0_i32_0 = arith.constant 0 : i32
    %c0_i32_1 = arith.constant 0 : i32
    return %arg1, %arg0, %c0_i32, %c0_i32_0 : i32, i32, i32, i32
  }
}

</mosaic_0001>

<llo_original>
// kernel: tpu_custom_call.1
$region0: #{tpu_custom_call.1}
  #allocation0 [shape = 'u32[]', space=smem, size = 0x4, offset = 0x4, fixed_abs, tag = 'smem constant byte address 0x4 - core index']
  #allocation1 [shape = 'u32[144,128]{1,0:T(1,128)}', space=vmem, size = 0x12000, scoped, tag = 'internal scratch']
  %s0 = inlined_call_operand.vmem [shape: bf16[2,192,8], index: 0, kind: input, shape index: {}]
  %s1 = inlined_call_operand.vmem [shape: bf16[2,8,64], index: 1, kind: input, shape index: {}]
  %s2 = inlined_call_operand.vmem [shape: f32[1,64], index: 2, kind: input, shape index: {}]
  %s3 = inlined_call_operand.vmem [shape: f32[1,64], index: 3, kind: input, shape index: {}]
  %s4 = inlined_call_operand.vmem [shape: bf16[64,128], index: 4, kind: input, shape index: {}]
  %s5 = inlined_call_operand.vmem [shape: f32[1,128], index: 5, kind: input, shape index: {}]
  %s6 = inlined_call_operand.vmem [shape: f32[1,128], index: 6, kind: input, shape index: {}]
  %s7 = inlined_call_operand.hbm [shape: f32[2,2,1,128], index: 7, kind: output, shape index: {}]
  %s8 = sld [smem:[#allocation0]]
  $region65: #{tpu_custom_call.1} parent=0
    _
  %s10 = ssub.s32 1, %s8
  %s11 = scalar_select 0, %s10, %s8
  $region1: #{tpu_custom_call.1} parent=0
    #allocation2 [shape = 'u8[1024]{0}', space=vmem, size = 0x400, scoped, tag = 'output window, operand 0']
    #allocation3 [shape = 's32[2]{0}', space=sflag, size = 0x8, scoped, tag = 'scoped memory for tpu_custom_call.1']
    %12 = vsyncpa [#allocation3], 0
    %s13 = scalar_lea.sflag [#allocation3], 1
    %14 = vsyncpa %s13, 0
    loop: start=0, step=1, limit=10
    $region2: #{tpu_custom_call.1} parent=1 // loop_pre_header
      _
    $region3: #{tpu_custom_call.1} parent=1 // loop_header
      %s16 = sphi 0, %s20
      %p17 = scmp.ge.s32.totalorder %s16, 10
      %s23 = sphi 0, %s42
      %s24 = sphi 0, %s38
      %s25 = sphi 0, %s34
      %s26 = sphi 0, %s23
      %s27 = sphi 0, %s24
      %s28 = sphi 0, %s25
      %s29 = sphi 0, %s26
      %s30 = sphi 0, %s27
      %s31 = sphi 0, %s28
      %s55 = sphi 0, %s57
      %s58 = sphi 0, %s55
      %s59 = sphi 0, %s58
      %s75 = sphi 0, %s59
      %s81 = sphi 0, %s83
      %s84 = sphi 0, %s81
      %s85 = sphi 0, %s84
      %s101 = sphi 0, %s85
      %s105 = sphi 0, %s105
      %s107 = sphi 0, %s105
      %s108 = sphi 0, %s107
      %s122 = sphi 0, %s108
      %s126 = sphi 0, %s126
      %s128 = sphi 0, %s126
      %s129 = sphi 0, %s128
      %s143 = sphi 0, %s129
      %s147 = sphi 0, %s147
      %s149 = sphi 0, %s147
      %s150 = sphi 0, %s149
      %s164 = sphi 0, %s150
      %s168 = sphi 0, %s168
      %s170 = sphi 0, %s168
      %s171 = sphi 0, %s170
      %s185 = sphi 0, %s171
      %s189 = sphi 0, %s189
      %s191 = sphi 0, %s189
      %s192 = sphi 0, %s191
      %s206 = sphi 0, %s192
      %s214 = sphi 0, %s216
      %s217 = sphi 0, %s214
      %s218 = sphi 0, %s217
      %s234 = sphi 0, %s218
    $region4: #{tpu_custom_call.1} parent=1 // loop_header_branch
      %19 = sbr.rel (%p17) target = $region8
    $region5: #{tpu_custom_call.1} parent=1 // loop_body
      %s21 = ssub.s32 %s16, 1
      %s22 = ssub.s32 %s16, 2
      %s32 = sadd.s32 1, %s25
      %p33 = scmp.ge.s32.totalorder %s32, 2
      %s34 = scalar_select %p33, 0, %s32
      %s35 = sadd.s32 1, %s24
      %s36 = scalar_select %p33, %s35, %s24
      %p37 = scmp.ge.s32.totalorder %s36, 2
      %s38 = scalar_select %p37, 0, %s36
      %s39 = sadd.s32 1, %s23
      %s40 = scalar_select %p37, %s39, %s23
      %p41 = scmp.ge.s32.totalorder %s40, 2
      %s42 = scalar_select %p41, 0, %s40
      %s43 = smul.u32 %s24, 2
      %s44 = sadd.s32 %s43, %s25
      %p45 = scmp.lt.s32.totalorder %s44, 2
      %s46 = scalar_select %p45, %s44, 2
      %s47 = smul.u32 %s38, 2
      %s48 = sadd.s32 %s47, %s34
      %p49 = scmp.lt.s32.totalorder %s48, 2
      %s50 = scalar_select %p49, %s48, 2
      %s51 = ssub.s32 %s23, %s42
      %s52 = ssub.s32 %s46, %s50
      %s53 = sor.u32 %s51, %s52
      %p54 = scmp.eq.s32.totalorder %s53, 0
      %s56 = sadd.s32 %s55, 1
      %s57 = scalar_select %p54, %s55, %s56
      %p60 = pneg %p54
      %p61 = scmp.eq.s32.totalorder %s16, 7
      %p62 = por %p60, %p61
      %p63 = scmp.ne.s32.totalorder %s55, %s58
      %p64 = scmp.eq.s32.totalorder %s16, 0
      %p65 = por %p63, %p64
      %p66 = scmp.ne.s32.totalorder %s55, %s58
      %p67 = scmp.eq.s32.totalorder %s21, 7
      %p68 = por %p66, %p67
      %p69 = scmp.ne.s32.totalorder %s58, %s59
      %p70 = scmp.eq.s32.totalorder %s21, 0
      %p71 = por %p69, %p70
      %p72 = scmp.ne.s32.totalorder %s58, %s59
      %p73 = scmp.eq.s32.totalorder %s22, 7
      %p74 = por %p72, %p73
      %p76 = scmp.ne.s32.totalorder %s59, %s75
      %p77 = scmp.eq.s32.totalorder %s22, 0
      %p78 = por %p76, %p77
      %s79 = ssub.s32 %s23, %s42
      %p80 = scmp.eq.s32.totalorder %s79, 0
      %s82 = sadd.s32 %s81, 1
      %s83 = scalar_select %p80, %s81, %s82
      %p86 = pneg %p80
      %p87 = scmp.eq.s32.totalorder %s16, 7
      %p88 = por %p86, %p87
      %p89 = scmp.ne.s32.totalorder %s81, %s84
      %p90 = scmp.eq.s32.totalorder %s16, 0
      %p91 = por %p89, %p90
      %p92 = scmp.ne.s32.totalorder %s81, %s84
      %p93 = scmp.eq.s32.totalorder %s21, 7
      %p94 = por %p92, %p93
      %p95 = scmp.ne.s32.totalorder %s84, %s85
      %p96 = scmp.eq.s32.totalorder %s21, 0
      %p97 = por %p95, %p96
      %p98 = scmp.ne.s32.totalorder %s84, %s85
      %p99 = scmp.eq.s32.totalorder %s22, 7
      %p100 = por %p98, %p99
      %p102 = scmp.ne.s32.totalorder %s85, %s101
      %p103 = scmp.eq.s32.totalorder %s22, 0
      %p104 = por %p102, %p103
      %s106 = sadd.s32 %s105, 1
      %p109 = scmp.eq.s32.totalorder %s16, 7
      %p110 = scmp.ne.s32.totalorder %s105, %s107
      %p111 = scmp.eq.s32.totalorder %s16, 0
      %p112 = por %p110, %p111
      %p113 = scmp.ne.s32.totalorder %s105, %s107
      %p114 = scmp.eq.s32.totalorder %s21, 7
      %p115 = por %p113, %p114
      %p116 = scmp.ne.s32.totalorder %s107, %s108
      %p117 = scmp.eq.s32.totalorder %s21, 0
      %p118 = por %p116, %p117
      %p119 = scmp.ne.s32.totalorder %s107, %s108
      %p120 = scmp.eq.s32.totalorder %s22, 7
      %p121 = por %p119, %p120
      %p123 = scmp.ne.s32.totalorder %s108, %s122
      %p124 = scmp.eq.s32.totalorder %s22, 0
      %p125 = por %p123, %p124
      %s127 = sadd.s32 %s126, 1
      %p130 = scmp.eq.s32.totalorder %s16, 7
      %p131 = scmp.ne.s32.totalorder %s126, %s128
      %p132 = scmp.eq.s32.totalorder %s16, 0
      %p133 = por %p131, %p132
      %p134 = scmp.ne.s32.totalorder %s126, %s128
      %p135 = scmp.eq.s32.totalorder %s21, 7
      %p136 = por %p134, %p135
      %p137 = scmp.ne.s32.totalorder %s128, %s129
      %p138 = scmp.eq.s32.totalorder %s21, 0
      %p139 = por %p137, %p138
      %p140 = scmp.ne.s32.totalorder %s128, %s129
      %p141 = scmp.eq.s32.totalorder %s22, 7
      %p142 = por %p140, %p141
      %p144 = scmp.ne.s32.totalorder %s129, %s143
      %p145 = scmp.eq.s32.totalorder %s22, 0
      %p146 = por %p144, %p145
      %s148 = sadd.s32 %s147, 1
      %p151 = scmp.eq.s32.totalorder %s16, 7
      %p152 = scmp.ne.s32.totalorder %s147, %s149
      %p153 = scmp.eq.s32.totalorder %s16, 0
      %p154 = por %p152, %p153
      %p155 = scmp.ne.s32.totalorder %s147, %s149
      %p156 = scmp.eq.s32.totalorder %s21, 7
      %p157 = por %p155, %p156
      %p158 = scmp.ne.s32.totalorder %s149, %s150
      %p159 = scmp.eq.s32.totalorder %s21, 0
      %p160 = por %p158, %p159
      %p161 = scmp.ne.s32.totalorder %s149, %s150
      %p162 = scmp.eq.s32.totalorder %s22, 7
      %p163 = por %p161, %p162
      %p165 = scmp.ne.s32.totalorder %s150, %s164
      %p166 = scmp.eq.s32.totalorder %s22, 0
      %p167 = por %p165, %p166
      %s169 = sadd.s32 %s168, 1
      %p172 = scmp.eq.s32.totalorder %s16, 7
      %p173 = scmp.ne.s32.totalorder %s168, %s170
      %p174 = scmp.eq.s32.totalorder %s16, 0
      %p175 = por %p173, %p174
      %p176 = scmp.ne.s32.totalorder %s168, %s170
      %p177 = scmp.eq.s32.totalorder %s21, 7
      %p178 = por %p176, %p177
      %p179 = scmp.ne.s32.totalorder %s170, %s171
      %p180 = scmp.eq.s32.totalorder %s21, 0
      %p181 = por %p179, %p180
      %p182 = scmp.ne.s32.totalorder %s170, %s171
      %p183 = scmp.eq.s32.totalorder %s22, 7
      %p184 = por %p182, %p183
      %p186 = scmp.ne.s32.totalorder %s171, %s185
      %p187 = scmp.eq.s32.totalorder %s22, 0
      %p188 = por %p186, %p187
      %s190 = sadd.s32 %s189, 1
      %p193 = scmp.eq.s32.totalorder %s16, 7
      %p194 = scmp.ne.s32.totalorder %s189, %s191
      %p195 = scmp.eq.s32.totalorder %s16, 0
      %p196 = por %p194, %p195
      %p197 = scmp.ne.s32.totalorder %s189, %s191
      %p198 = scmp.eq.s32.totalorder %s21, 7
      %p199 = por %p197, %p198
      %p200 = scmp.ne.s32.totalorder %s191, %s192
      %p201 = scmp.eq.s32.totalorder %s21, 0
      %p202 = por %p200, %p201
      %p203 = scmp.ne.s32.totalorder %s191, %s192
      %p204 = scmp.eq.s32.totalorder %s22, 7
      %p205 = por %p203, %p204
      %p207 = scmp.ne.s32.totalorder %s192, %s206
      %p208 = scmp.eq.s32.totalorder %s22, 0
      %p209 = por %p207, %p208
      %s210 = ssub.s32 %s24, %s38
      %s211 = ssub.s32 %s23, %s42
      %s212 = sor.u32 %s210, %s211
      %p213 = scmp.eq.s32.totalorder %s212, 0
      %s215 = sadd.s32 %s214, 1
      %s216 = scalar_select %p213, %s214, %s215
      %p219 = pneg %p213
      %p220 = scmp.eq.s32.totalorder %s16, 7
      %p221 = por %p219, %p220
      %p222 = scmp.ne.s32.totalorder %s214, %s217
      %p223 = scmp.eq.s32.totalorder %s16, 0
      %p224 = por %p222, %p223
      %p225 = scmp.ne.s32.totalorder %s214, %s217
      %p226 = scmp.eq.s32.totalorder %s21, 7
      %p227 = por %p225, %p226
      %p228 = scmp.ne.s32.totalorder %s217, %s218
      %p229 = scmp.eq.s32.totalorder %s21, 0
      %p230 = por %p228, %p229
      %p231 = scmp.ne.s32.totalorder %s217, %s218
      %p232 = scmp.eq.s32.totalorder %s22, 7
      %p233 = por %p231, %p232
      %p235 = scmp.ne.s32.totalorder %s218, %s234
      %p236 = scmp.eq.s32.totalorder %s22, 0
      %p237 = por %p235, %p236
      %p238 = scmp.le.s32.totalorder 1, %s16
      %p239 = scmp.lt.s32.totalorder %s16, 9
      %p240 = pnand %p238, %p239
      %p241 = pneg %p240
      // Predicated region
      $region9: #{tpu_custom_call.1} parent=5 // pred_check
        _
      $region10: #{tpu_custom_call.1} parent=5 // pred_check_branch
        %243 = sbr.rel (%p240) target = $region12
      $region11: #{tpu_custom_call.1} parent=5 // pred_region
        %s244 = ssub.s32 %s16, 1
        // Predicated region
        $region13: #{tpu_custom_call.1} parent=11 // pred_check
          %p245 = pneg %p118
        $region14: #{tpu_custom_call.1} parent=11 // pred_check_branch
          %247 = sbr.rel (%p245) target = $region16
        $region15: #{tpu_custom_call.1} parent=11 // pred_region
          _
        $region16: #{tpu_custom_call.1} parent=11 // pred_fallthru
          _
        // Predicated region
        $region17: #{tpu_custom_call.1} parent=11 // pred_check
          %p248 = pneg %p139
        $region18: #{tpu_custom_call.1} parent=11 // pred_check_branch
          %250 = sbr.rel (%p248) target = $region20
        $region19: #{tpu_custom_call.1} parent=11 // pred_region
          _
        $region20: #{tpu_custom_call.1} parent=11 // pred_fallthru
          _
        // Predicated region
        $region21: #{tpu_custom_call.1} parent=11 // pred_check
          %p251 = pneg %p160
        $region22: #{tpu_custom_call.1} parent=11 // pred_check_branch
          %253 = sbr.rel (%p251) target = $region24
        $region23: #{tpu_custom_call.1} parent=11 // pred_region
          _
        $region24: #{tpu_custom_call.1} parent=11 // pred_fallthru
          _
        // Predicated region
        $region25: #{tpu_custom_call.1} parent=11 // pred_check
          %p254 = pneg %p181
        $region26: #{tpu_custom_call.1} parent=11 // pred_check_branch
          %256 = sbr.rel (%p254) target = $region28
        $region27: #{tpu_custom_call.1} parent=11 // pred_region
          _
        $region28: #{tpu_custom_call.1} parent=11 // pred_fallthru
          _
        // Predicated region
        $region29: #{tpu_custom_call.1} parent=11 // pred_check
          %p257 = pneg %p202
        $region30: #{tpu_custom_call.1} parent=11 // pred_check_branch
          %259 = sbr.rel (%p257) target = $region32
        $region31: #{tpu_custom_call.1} parent=11 // pred_region
          _
        $region32: #{tpu_custom_call.1} parent=11 // pred_fallthru
          _
      $region12: #{tpu_custom_call.1} parent=5 // pred_fallthru
        _
      %p260 = scmp.lt.s32.totalorder %s16, 8
      // Predicated region
      $region33: #{tpu_custom_call.1} parent=5 // pred_check
        %p261 = pneg %p260
      $region34: #{tpu_custom_call.1} parent=5 // pred_check_branch
        %263 = sbr.rel (%p261) target = $region36
      $region35: #{tpu_custom_call.1} parent=5 // pred_region
        // Predicated region
        $region37: #{tpu_custom_call.1} parent=35 // pred_check
          %p264 = pneg %p65
        $region38: #{tpu_custom_call.1} parent=35 // pred_check_branch
          %266 = sbr.rel (%p264) target = $region40
        $region39: #{tpu_custom_call.1} parent=35 // pred_region
          %s267 = smul.u32 %s24, 2
          %s268 = sadd.s32 %s267, %s25
          %p269 = scmp.lt.s32.totalorder %s268, 2
          %s270 = scalar_select %p269, %s268, 2
          %s271 = smul.u32 8, %s270
          %p272 = scmp.lt.s32.totalorder %s23, 1
          %s273 = scalar_select %p272, %s23, 1
          %p274 = scmp.lt.s32.totalorder %s271, 23
          %s275 = scalar_select %p274, %s271, 23
          %s276 = smul.addr %s273, 24
          %s277 = sadd.s32 %s275, %s276
          %s278 = smul.addr %s277, 4
          %s279 = scalar_lea.vmem %s0, %s278
          %s280 = smul.u32 %s24, 2
          %s281 = sadd.s32 %s280, %s25
          %p282 = scmp.lt.s32.totalorder %s281, 2
          %s283 = scalar_select %p282, %s281, 2
          %s284 = smul.u32 8, %s283
        $region40: #{tpu_custom_call.1} parent=35 // pred_fallthru
          _
        // Predicated region
        $region41: #{tpu_custom_call.1} parent=35 // pred_check
          %p285 = pneg %p91
        $region42: #{tpu_custom_call.1} parent=35 // pred_check_branch
          %287 = sbr.rel (%p285) target = $region44
        $region43: #{tpu_custom_call.1} parent=35 // pred_region
          %p288 = scmp.lt.s32.totalorder %s23, 1
          %s289 = scalar_select %p288, %s23, 1
          %s290 = smul.addr %s289, 4
          %s291 = scalar_lea.vmem %s1, %s290
        $region44: #{tpu_custom_call.1} parent=35 // pred_fallthru
          _
      $region36: #{tpu_custom_call.1} parent=5 // pred_fallthru
        _
      %p292 = scmp.le.s32.totalorder 1, %s16
      %p293 = scmp.lt.s32.totalorder %s16, 9
      %p294 = pnand %p292, %p293
      %p295 = pneg %p294
      // Predicated region
      $region45: #{tpu_custom_call.1} parent=5 // pred_check
        _
      $region46: #{tpu_custom_call.1} parent=5 // pred_check_branch
        %297 = sbr.rel (%p294) target = $region48
      $region47: #{tpu_custom_call.1} parent=5 // pred_region
        %s298 = ssub.s32 %s16, 1
        %s299 = smul.u32 %s27, 2
        %s300 = sadd.s32 %s299, %s28
        %p301 = scmp.lt.s32.totalorder %s300, 2
        %s302 = scalar_select %p301, %s300, 2
        %s303 = smul.u32 8, %s302
        %p304 = scmp.lt.s32.totalorder %s26, 1
        %s305 = scalar_select %p304, %s26, 1
        %p306 = scmp.lt.s32.totalorder %s303, 23
        %s307 = scalar_select %p306, %s303, 23
        %s308 = smul.addr %s305, 24
        %s309 = sadd.s32 %s307, %s308
        %s310 = smul.addr %s309, 4
        %s311 = scalar_lea.vmem %s0, %s310
        %p312 = pneg %p71
        %p313 = pneg %p68
        %p314 = scmp.lt.s32.totalorder %s26, 1
        %s315 = scalar_select %p314, %s26, 1
        %s316 = smul.addr %s315, 4
        %s317 = scalar_lea.vmem %s1, %s316
        %p318 = pneg %p97
        %p319 = pneg %p94
        %p320 = pneg %p118
        %p321 = pneg %p115
        %p322 = pneg %p139
        %p323 = pneg %p136
        %p324 = pneg %p160
        %p325 = pneg %p157
        %p326 = pneg %p181
        %p327 = pneg %p178
        %p328 = pneg %p202
        %p329 = pneg %p199
        %p330 = pneg %p230
        %p331 = pneg %p227
        %s332 = sand.u32 %s217, 1
        %s333 = scalar_lea.sflag [#allocation3], %s332
        %s334 = sand.u32 %s217, 1
        %s335 = scalar_lea.vmem [#allocation2], %s334
        %s336 = smul.u32 %s27, 2
        %s337 = sadd.s32 %s336, %s28
        %p338 = scmp.lt.s32.totalorder %s337, 2
        %s339 = scalar_select %p338, %s337, 2
        %s340 = smul.u32 8, %s339
        %p341 = scmp.lt.s32.totalorder %s26, 1
        %s342 = scalar_select %p341, %s26, 1
        %p343 = scmp.lt.s32.totalorder %s340, 23
        %s344 = scalar_select %p343, %s340, 23
        %s345 = smul.addr %s342, 24
        %s346 = sadd.s32 %s344, %s345
        %s347 = smul.addr %s346, 4
        %s348 = scalar_lea.vmem %s0, %s347
        %s349 = smul.u32 %s27, 2
        %s350 = sadd.s32 %s349, %s28
        %p351 = scmp.lt.s32.totalorder %s350, 2
        %s352 = scalar_select %p351, %s350, 2
        %s353 = smul.u32 8, %s352
        %p354 = scmp.lt.s32.totalorder %s26, 1
        %s355 = scalar_select %p354, %s26, 1
        %s356 = smul.addr %s355, 4
        %s357 = scalar_lea.vmem %s1, %s356
        %p359 = scmp.eq.s32.totalorder %s28, 0
        // Predicated region
        $region49: #{tpu_custom_call.1} parent=47 // pred_check
          %p360 = pneg %p359
        $region50: #{tpu_custom_call.1} parent=47 // pred_check_branch
          %362 = sbr.rel (%p360) target = $region52
        $region51: #{tpu_custom_call.1} parent=47 // pred_region
          %363 = vst [vmem:[%s335] sm:$0x1] -inf
        $region52: #{tpu_custom_call.1} parent=47 // pred_fallthru
          _
        %v364 = vld [vmem:[%s348] sm:$0xf]
        %v365 = vld [vmem:[%s348 + $0x4] sm:$0xf]
        %v366 = vld [vmem:[%s348 + $0x8] sm:$0xf]
        %v367 = vld [vmem:[%s348 + $0xc] sm:$0xf]
        %v368 = vld [vmem:[%s348 + $0x10] sm:$0xf]
        %v369 = vld [vmem:[%s348 + $0x14] sm:$0xf]
        %v370 = vld [vmem:[%s348 + $0x18] sm:$0xf]
        %v371 = vld [vmem:[%s348 + $0x1c] sm:$0xf]
        %v372 = vld [vmem:[%s357] sm:$0xf]
        %v381 = vunpack.c.l.b16 %v364
        %v382 = vunpack.c.l.b16 %v365
        %v383 = vunpack.c.l.b16 %v366
        %v384 = vunpack.c.l.b16 %v367
        %v385 = vunpack.c.l.b16 %v368
        %v386 = vunpack.c.l.b16 %v369
        %v387 = vunpack.c.l.b16 %v370
        %v388 = vunpack.c.l.b16 %v371
        %v389 = vpack.c.b16 %v382, %v381
        %v390 = vpack.c.b16 %v384, %v383
        %v391 = vpack.c.b16 %v386, %v385
        %v392 = vpack.c.b16 %v388, %v387
        %vm393 = vcmask 64512
        %v395 = vsel %vm393, %v389, 0
        %v398 = vsel %vm393, %v390, 0
        %v401 = vsel %vm393, %v391, 0
        %v404 = vsel %vm393, %v392, 0
        %vm406 = vcmask 1043456
        %v408 = vsel %vm406, %v372, 0
        %410 = vmatprep.subr.bf16.mxu0 0
        %411 = vmatpush1.bf16.msra.mxu0 %v408
        %412 = vmatprep.subr.bf16.mxu0 0
        %413 = vmatpush1.bf16.msra.mxu0 0
        %414 = vmatprep.subr.bf16.mxu0 0
        %415 = vmatpush1.bf16.msra.mxu0 0
        %416 = vmatprep.subr.bf16.mxu0 0
        %417 = vmatpush1.bf16.msra.mxu0 0
        %418 = vmatprep.subr.bf16.mxu0 0
        %419 = vmatpush1.bf16.msra.mxu0 0
        %420 = vmatprep.subr.bf16.mxu0 0
        %421 = vmatpush1.bf16.msra.mxu0 0
        %422 = vmatprep.subr.bf16.mxu0 0
        %423 = vmatpush1.bf16.msra.mxu0 0
        %424 = vmatprep.subr.bf16.mxu0 0
        %425 = vmatpush1.bf16.msra.mxu0 0
        %426 = vmatprep.subr.bf16.mxu0 0
        %427 = vmatpush1.bf16.msra.mxu0 0
        %428 = vmatprep.subr.bf16.mxu0 0
        %429 = vmatpush1.bf16.msra.mxu0 0
        %430 = vmatprep.subr.bf16.mxu0 0
        %431 = vmatpush1.bf16.msra.mxu0 0
        %432 = vmatprep.subr.bf16.mxu0 0
        %433 = vmatpush1.bf16.msra.mxu0 0
        %434 = vmatprep.subr.bf16.mxu0 0
        %435 = vmatpush1.bf16.msra.mxu0 0
        %436 = vmatprep.subr.bf16.mxu0 0
        %437 = vmatpush1.bf16.msra.mxu0 0
        %438 = vmatprep.subr.bf16.mxu0 0
        %439 = vmatpush1.bf16.msra.mxu0 0
        %440 = vmatprep.subr.bf16.mxu0 0
        %441 = vmatpush1.bf16.msra.mxu0 0
        %442 = vmatprep.mubr.bf16.mxu0 0
        %443 = vmatmul.mubr.bf16.gmra.mrb[0].mxu0 %v395
        %v444 = vpop.f32.mrb[0].mxu0
        %v445 = vadd.f32 0.0, %v444
        %v446 = vpop.f32.mrb[0].mxu0
        %v447 = vpop.f32.mrb[0].mxu0
        %v448 = vadd.f32 0.0, %v447
        %v449 = vpop.f32.mrb[0].mxu0
        %450 = vmatprep.mubr.bf16.mxu0 0
        %451 = vmatmul.mubr.bf16.gmra.mrb[0].mxu0 %v398
        %v452 = vpop.f32.mrb[0].mxu0
        %v453 = vadd.f32 0.0, %v452
        %v454 = vpop.f32.mrb[0].mxu0
        %v455 = vpop.f32.mrb[0].mxu0
        %v456 = vadd.f32 0.0, %v455
        %v457 = vpop.f32.mrb[0].mxu0
        %458 = vmatprep.mubr.bf16.mxu0 0
        %459 = vmatmul.mubr.bf16.gmra.mrb[0].mxu0 %v401
        %v460 = vpop.f32.mrb[0].mxu0
        %v461 = vadd.f32 0.0, %v460
        %v462 = vpop.f32.mrb[0].mxu0
        %v463 = vpop.f32.mrb[0].mxu0
        %v464 = vadd.f32 0.0, %v463
        %v465 = vpop.f32.mrb[0].mxu0
        %466 = vmatprep.mubr.bf16.mxu0 0
        %467 = vmatmul.mubr.bf16.gmra.mrb[0].mxu0 %v404
        %v468 = vpop.f32.mrb[0].mxu0
        %v469 = vadd.f32 0.0, %v468
        %v470 = vpop.f32.mrb[0].mxu0
        %v471 = vpop.f32.mrb[0].mxu0
        %v472 = vadd.f32 0.0, %v471
        %v473 = vpop.f32.mrb[0].mxu0
        %474 = vdwg.mxu0
        %v475 = vld [vmem:[%s2] sm:$0x1]
        %v477 = vlaneseq
        %v478 = vshrl.u32 %v477, 7
        %v479 = vsub.s32 0, %v478
        %v480 = vrot.slane %v475, %v479
        %v482 = vmul.f32 %v445, %v480
        %v483 = vmul.f32 %v448, %v480
        %v484 = vmul.f32 %v453, %v480
        %v485 = vmul.f32 %v456, %v480
        %v486 = vmul.f32 %v461, %v480
        %v487 = vmul.f32 %v464, %v480
        %v488 = vmul.f32 %v469, %v480
        %v489 = vmul.f32 %v472, %v480
        %v490 = vld [vmem:[%s3] sm:$0x1]
        %v492 = vlaneseq
        %v493 = vshrl.u32 %v492, 7
        %v494 = vsub.s32 0, %v493
        %v495 = vrot.slane %v490, %v494
        %v497 = vadd.f32 %v482, %v495
        %v498 = vadd.f32 %v483, %v495
        %v499 = vadd.f32 %v484, %v495
        %v500 = vadd.f32 %v485, %v495
        %v501 = vadd.f32 %v486, %v495
        %v502 = vadd.f32 %v487, %v495
        %v503 = vadd.f32 %v488, %v495
        %v504 = vadd.f32 %v489, %v495
        %v505 = vmax.f32 %v497, 0.0
        %v506 = vmax.f32 %v498, 0.0
        %v507 = vmax.f32 %v499, 0.0
        %v508 = vmax.f32 %v500, 0.0
        %v509 = vmax.f32 %v501, 0.0
        %v510 = vmax.f32 %v502, 0.0
        %v511 = vmax.f32 %v503, 0.0
        %v512 = vmax.f32 %v504, 0.0
        %v513 = vpack.c.bf16 %v506, %v505
        %v514 = vpack.c.bf16 %v508, %v507
        %v515 = vpack.c.bf16 %v510, %v509
        %v516 = vpack.c.bf16 %v512, %v511
        %v517 = vld [vmem:[%s4] sm:$0xf]
        %v518 = vld [vmem:[%s4 + $0x4] sm:$0xf]
        %v519 = vld [vmem:[%s4 + $0x8] sm:$0xf]
        %v520 = vld [vmem:[%s4 + $0xc] sm:$0xf]
        %v521 = vld [vmem:[%s4 + $0x10] sm:$0xf]
        %v522 = vld [vmem:[%s4 + $0x14] sm:$0xf]
        %v523 = vld [vmem:[%s4 + $0x18] sm:$0xf]
        %v524 = vld [vmem:[%s4 + $0x1c] sm:$0xf]
        %v533 = vunpack.c.l.b16 %v517
        %v534 = vunpack.c.l.b16 %v518
        %v535 = vunpack.c.l.b16 %v519
        %v536 = vunpack.c.l.b16 %v520
        %v537 = vunpack.c.l.b16 %v521
        %v538 = vunpack.c.l.b16 %v522
        %v539 = vunpack.c.l.b16 %v523
        %v540 = vunpack.c.l.b16 %v524
        %v541 = vpack.c.b16 %v534, %v533
        %v542 = vpack.c.b16 %v536, %v535
        %v543 = vpack.c.b16 %v538, %v537
        %v544 = vpack.c.b16 %v540, %v539
        %vm549 = vcmask 523264
        %v551 = vsel %vm549, %v513, 0
        %v554 = vsel %vm549, %v514, 0
        %v557 = vsel %vm549, %v515, 0
        %v560 = vsel %vm549, %v516, 0
        %562 = vmatprep.subr.bf16.mxu0 0
        %563 = vmatpush1.bf16.msra.mxu0 %v541
        %564 = vmatprep.subr.bf16.mxu0 0
        %565 = vmatpush1.bf16.msra.mxu0 %v542
        %566 = vmatprep.subr.bf16.mxu0 0
        %567 = vmatpush1.bf16.msra.mxu0 %v543
        %568 = vmatprep.subr.bf16.mxu0 0
        %569 = vmatpush1.bf16.msra.mxu0 %v544
        %570 = vmatprep.subr.bf16.mxu0 0
        %571 = vmatpush1.bf16.msra.mxu0 0
        %572 = vmatprep.subr.bf16.mxu0 0
        %573 = vmatpush1.bf16.msra.mxu0 0
        %574 = vmatprep.subr.bf16.mxu0 0
        %575 = vmatpush1.bf16.msra.mxu0 0
        %576 = vmatprep.subr.bf16.mxu0 0
        %577 = vmatpush1.bf16.msra.mxu0 0
        %578 = vmatprep.subr.bf16.mxu0 0
        %579 = vmatpush1.bf16.msra.mxu0 0
        %580 = vmatprep.subr.bf16.mxu0 0
        %581 = vmatpush1.bf16.msra.mxu0 0
        %582 = vmatprep.subr.bf16.mxu0 0
        %583 = vmatpush1.bf16.msra.mxu0 0
        %584 = vmatprep.subr.bf16.mxu0 0
        %585 = vmatpush1.bf16.msra.mxu0 0
        %586 = vmatprep.subr.bf16.mxu0 0
        %587 = vmatpush1.bf16.msra.mxu0 0
        %588 = vmatprep.subr.bf16.mxu0 0
        %589 = vmatpush1.bf16.msra.mxu0 0
        %590 = vmatprep.subr.bf16.mxu0 0
        %591 = vmatpush1.bf16.msra.mxu0 0
        %592 = vmatprep.subr.bf16.mxu0 0
        %593 = vmatpush1.bf16.msra.mxu0 0
        %594 = vmatprep.mubr.bf16.mxu0 0
        %595 = vmatmul.mubr.bf16.gmra.mrb[0].mxu0 %v551
        %v596 = vpop.f32.mrb[0].mxu0
        %v597 = vadd.f32 0.0, %v596
        %v598 = vpop.f32.mrb[0].mxu0
        %v599 = vpop.f32.mrb[0].mxu0
        %v600 = vadd.f32 0.0, %v599
        %v601 = vpop.f32.mrb[0].mxu0
        %602 = vmatprep.mubr.bf16.mxu0 0
        %603 = vmatmul.mubr.bf16.gmra.mrb[0].mxu0 %v554
        %v604 = vpop.f32.mrb[0].mxu0
        %v605 = vadd.f32 0.0, %v604
        %v606 = vpop.f32.mrb[0].mxu0
        %v607 = vpop.f32.mrb[0].mxu0
        %v608 = vadd.f32 0.0, %v607
        %v609 = vpop.f32.mrb[0].mxu0
        %610 = vmatprep.mubr.bf16.mxu0 0
        %611 = vmatmul.mubr.bf16.gmra.mrb[0].mxu0 %v557
        %v612 = vpop.f32.mrb[0].mxu0
        %v613 = vadd.f32 0.0, %v612
        %v614 = vpop.f32.mrb[0].mxu0
        %v615 = vpop.f32.mrb[0].mxu0
        %v616 = vadd.f32 0.0, %v615
        %v617 = vpop.f32.mrb[0].mxu0
        %618 = vmatprep.mubr.bf16.mxu0 0
        %619 = vmatmul.mubr.bf16.gmra.mrb[0].mxu0 %v560
        %v620 = vpop.f32.mrb[0].mxu0
        %v621 = vadd.f32 0.0, %v620
        %v622 = vpop.f32.mrb[0].mxu0
        %v623 = vpop.f32.mrb[0].mxu0
        %v624 = vadd.f32 0.0, %v623
        %v625 = vpop.f32.mrb[0].mxu0
        %626 = vdwg.mxu0
        %v627 = vld [vmem:[%s5] sm:$0x1]
        %v629 = vlaneseq
        %v630 = vshrl.u32 %v629, 7
        %v631 = vsub.s32 0, %v630
        %v632 = vrot.slane %v627, %v631
        %v634 = vmul.f32 %v597, %v632
        %v635 = vmul.f32 %v600, %v632
        %v636 = vmul.f32 %v605, %v632
        %v637 = vmul.f32 %v608, %v632
        %v638 = vmul.f32 %v613, %v632
        %v639 = vmul.f32 %v616, %v632
        %v640 = vmul.f32 %v621, %v632
        %v641 = vmul.f32 %v624, %v632
        %v642 = vld [vmem:[%s6] sm:$0x1]
        %v644 = vlaneseq
        %v645 = vshrl.u32 %v644, 7
        %v646 = vsub.s32 0, %v645
        %v647 = vrot.slane %v642, %v646
        %v649 = vadd.f32 %v634, %v647
        %v650 = vadd.f32 %v635, %v647
        %v651 = vadd.f32 %v636, %v647
        %v652 = vadd.f32 %v637, %v647
        %v653 = vadd.f32 %v638, %v647
        %v654 = vadd.f32 %v639, %v647
        %v655 = vadd.f32 %v640, %v647
        %v656 = vadd.f32 %v641, %v647
        %v657 = vmax.f32 %v649, 0.0
        %v658 = vmax.f32 %v650, 0.0
        %v659 = vmax.f32 %v651, 0.0
        %v660 = vmax.f32 %v652, 0.0
        %v661 = vmax.f32 %v653, 0.0
        %v662 = vmax.f32 %v654, 0.0
        %v663 = vmax.f32 %v655, 0.0
        %v664 = vmax.f32 %v656, 0.0
        %s665 = smul.u32 %s27, 2
        %s666 = sadd.s32 %s665, %s28
        %s667 = smul.u32 %s666, 64
        %v668 = vlaneseq
        %v669 = vshrl.u32 %v668, 7
        %v670 = vadd.s32 %v669, 8
        %v671 = vadd.s32 %v669, 16
        %v672 = vadd.s32 %v669, 24
        %v673 = vadd.s32 %v669, 32
        %v674 = vadd.s32 %v669, 40
        %v675 = vadd.s32 %v669, 48
        %v676 = vadd.s32 %v669, 56
        %v677 = vstv %s667
        %v678 = vadd.s32 %v677, %v669
        %v679 = vadd.s32 %v677, %v670
        %v680 = vadd.s32 %v677, %v671
        %v681 = vadd.s32 %v677, %v672
        %v682 = vadd.s32 %v677, %v673
        %v683 = vadd.s32 %v677, %v674
        %v684 = vadd.s32 %v677, %v675
        %v685 = vadd.s32 %v677, %v676
        %vm686 = vcmp.lt.s32.totalorder %v678, 192
        %vm687 = vcmp.lt.s32.totalorder %v679, 192
        %vm688 = vcmp.lt.s32.totalorder %v680, 192
        %vm689 = vcmp.lt.s32.totalorder %v681, 192
        %vm690 = vcmp.lt.s32.totalorder %v682, 192
        %vm691 = vcmp.lt.s32.totalorder %v683, 192
        %vm692 = vcmp.lt.s32.totalorder %v684, 192
        %vm693 = vcmp.lt.s32.totalorder %v685, 192
        %v694 = vsel %vm686, 1, 0
        %v695 = vsel %vm687, 1, 0
        %v696 = vsel %vm688, 1, 0
        %v697 = vsel %vm689, 1, 0
        %v698 = vsel %vm690, 1, 0
        %v699 = vsel %vm691, 1, 0
        %v700 = vsel %vm692, 1, 0
        %v701 = vsel %vm693, 1, 0
        %vm702 = vcmp.eq.s32.totalorder %v694, 1
        %vm703 = vcmp.eq.s32.totalorder %v695, 1
        %vm704 = vcmp.eq.s32.totalorder %v696, 1
        %vm705 = vcmp.eq.s32.totalorder %v697, 1
        %vm706 = vcmp.eq.s32.totalorder %v698, 1
        %vm707 = vcmp.eq.s32.totalorder %v699, 1
        %vm708 = vcmp.eq.s32.totalorder %v700, 1
        %vm709 = vcmp.eq.s32.totalorder %v701, 1
        %v710 = vsel %vm702, %v657, -inf
        %v711 = vsel %vm703, %v658, -inf
        %v712 = vsel %vm704, %v659, -inf
        %v713 = vsel %vm705, %v660, -inf
        %v714 = vsel %vm706, %v661, -inf
        %v715 = vsel %vm707, %v662, -inf
        %v716 = vsel %vm708, %v663, -inf
        %v717 = vsel %vm709, %v664, -inf
        %v718 = vmax.f32 %v710, %v714
        %v719 = vmax.f32 %v711, %v715
        %v720 = vmax.f32 %v712, %v716
        %v721 = vmax.f32 %v713, %v717
        %v722 = vmax.f32 %v718, %v719
        %v723 = vmax.f32 %v720, %v721
        %v724 = vmax.f32 %v722, %v723
        %v725 = vrot.slane %v724, 4
        %v726 = vmax.f32 %v724, %v725
        %v727 = vrot.slane %v726, 2
        %v728 = vmax.f32 %v726, %v727
        %v729 = vrot.slane %v728, 1
        %v730 = vmax.f32 %v728, %v729
        %v731 = vld [vmem:[%s335] sm:$0x1]
        %v732 = vmax.f32 %v731, %v730
        %733 = vst [vmem:[%s335] sm:$0x1] %v732
        %s734 = sand.u32 %s217, 1
        %s735 = scalar_lea.sflag [#allocation3], %s734
        %s736 = sand.u32 %s217, 1
        %s737 = scalar_lea.vmem [#allocation2], %s736
        // Predicated region
        $region53: #{tpu_custom_call.1} parent=47 // pred_check
          %p738 = pneg %p227
        $region54: #{tpu_custom_call.1} parent=47 // pred_check_branch
          %740 = sbr.rel (%p738) target = $region56
        $region55: #{tpu_custom_call.1} parent=47 // pred_region
          %s742 = ssub.s32 16, 16
          %743 = vsyncadd %s735, %s742
          %s744 = smul.addr %s27, 2
          %s745 = sadd.s32 %s26, %s744
          %s746 = smul.addr %s745, 16
          %s747 = scalar_lea.hbm %s7, %s746
          %s749 = sshll.u32 %s737, 4
          %s750 = int_to_ptr.vmem [resolvable:$true] %s749
          %752 = dma.vmem_to_hbm [thread:$0]  %s750, 16, %s747, %s735
        $region56: #{tpu_custom_call.1} parent=47 // pred_fallthru
          _
      $region48: #{tpu_custom_call.1} parent=5 // pred_fallthru
        _
      %p753 = scmp.le.s32.totalorder 2, %s16
      // Predicated region
      $region57: #{tpu_custom_call.1} parent=5 // pred_check
        %p754 = pneg %p753
      $region58: #{tpu_custom_call.1} parent=5 // pred_check_branch
        %756 = sbr.rel (%p754) target = $region60
      $region59: #{tpu_custom_call.1} parent=5 // pred_region
        %s757 = ssub.s32 %s16, 2
        // Predicated region
        $region61: #{tpu_custom_call.1} parent=59 // pred_check
          %p758 = pneg %p233
        $region62: #{tpu_custom_call.1} parent=59 // pred_check_branch
          %760 = sbr.rel (%p758) target = $region64
        $region63: #{tpu_custom_call.1} parent=59 // pred_region
          %s761 = sand.u32 %s218, 1
          %s762 = scalar_lea.sflag [#allocation3], %s761
          %s763 = sand.u32 %s218, 1
          %s764 = scalar_lea.vmem [#allocation2], %s763
          %765 = dma.done %s762, 16
        $region64: #{tpu_custom_call.1} parent=59 // pred_fallthru
          _
      $region60: #{tpu_custom_call.1} parent=5 // pred_fallthru
        _
    $region6: #{tpu_custom_call.1} parent=1 // loop_footer
      %s20 = sadd.s32 1, %s16
    $region7: #{tpu_custom_call.1} parent=1 // loop_footer_branch
      %15 = sbr.rel target = $region3
    $region8: #{tpu_custom_call.1} parent=1 // loop_exit
      _
    %766 = vsyncpa [#allocation3], 1
    %s767 = scalar_lea.sflag [#allocation3], 1
    %768 = vsyncpa %s767, 1

</llo_original>
